<compile_context>
chip_gen: v5e
topology: v5e:2x2
jax: 0.10.0
libtpu: 0.0.40
codegen_flags: <defaults>
</compile_context>

<pallas_src>
import math
import functools

import jax
import jax.numpy as jnp
from jax.experimental import pallas as pl
from jax.experimental.pallas import tpu as pltpu


def _layernorm(x, gamma, beta, eps=1e-5):
    mean = jnp.mean(x, axis=-1, keepdims=True)
    var = jnp.mean((x - mean) ** 2, axis=-1, keepdims=True)  # biased, like torch
    return (x - mean) * jax.lax.rsqrt(var + eps) * gamma + beta


# --------------------------------------------------------------------------
# Kernel 1: K / V projection (once per sequence row, not per query tile)
# --------------------------------------------------------------------------
def _kv_proj_kernel(x_ref, wk_ref, bk_ref, wv_ref, bv_ref, k_ref, v_ref):
    f32 = jnp.float32
    x = x_ref[0].astype(jnp.bfloat16)                                 # (TR, D)
    k = jnp.dot(x, wk_ref[...], preferred_element_type=f32) + bk_ref[...]
    v = jnp.dot(x, wv_ref[...], preferred_element_type=f32) + bv_ref[...]
    k_ref[0] = k.astype(k_ref.dtype)
    v_ref[0] = v.astype(v_ref.dtype)


# --------------------------------------------------------------------------
# Kernel 2: fused decoder layer (per batch x query tile)
# --------------------------------------------------------------------------
def _decoder_layer_kernel(
    xq_ref, kh_ref, vh_ref, mask_ref,
    g1_ref, b1_ref, wq_ref, bq_ref, wo_ref, bo_ref,
    g2_ref, b2_ref, wf1_ref, bf1_ref, wf2_ref, bf2_ref,
    z_ref,
    *, n_heads, n_layers, k_tile, n_ktiles):
    f32, bf16 = jnp.float32, jnp.bfloat16

    xq = xq_ref[0]                       # (TQ, D) f32 : query rows / residual
    TQ, D = xq.shape
    H = n_heads
    dh = D // H
    TK = k_tile
    inv_nl = f32(1.0 / math.sqrt(n_layers))
    scale = f32(1.0 / math.sqrt(dh))

    # ---- LayerNorm1 (f32 stats) + Q projection: bf16 MXU, f32 accumulation ----
    ln1 = _layernorm(xq, g1_ref[...], b1_ref[...])
    q = jnp.dot(ln1.astype(bf16), wq_ref[...], preferred_element_type=f32) + bq_ref[...]
    q = q * scale                        # fold 1/sqrt(dh) into q (cheaper than on scores)
    # Head split of Q only (K/V arrive pre-split from the wrapper):
    # H static lane slices of (TQ, dh) -> (H, TQ, dh).
    qh = jnp.stack([q[:, h * dh:(h + 1) * dh] for h in range(H)], axis=0).astype(bf16)

    # ---- key-chunked online softmax (flash style) ----
    def attend(t, carry):
        m_prev, l_prev, acc_prev = carry
        start = t * TK
        if not isinstance(start, int):
            start = pl.multiple_of(start, TK)
        k_c = kh_ref[0, :, pl.ds(start, TK), :]        # (H, TK, dh) bf16
        v_c = vh_ref[0, :, pl.ds(start, TK), :]        # (H, TK, dh) bf16
        keep = mask_ref[0, :, pl.ds(start, TK)] > 0    # (TQ, TK) bool, True = retain
        s = jax.lax.dot_general(qh, k_c, (((2,), (2,)), ((0,), (0,))),
                                preferred_element_type=f32)           # (H, TQ, TK)
        # Large finite fill instead of -inf: fully-masked rows stay NaN-free
        # (the torch -inf path would yield NaN there).
        s = jnp.where(keep[None, :, :], s, f32(-1e30))
        m_cur = jnp.max(s, axis=-1, keepdims=True)
        m_new = jnp.maximum(m_prev, m_cur)
        alpha = jnp.exp(m_prev - m_new)
        p = jnp.exp(s - m_new)
        l_new = alpha * l_prev + jnp.sum(p, axis=-1, keepdims=True)
        pv = jax.lax.dot_general(p.astype(bf16), v_c, (((2,), (1,)), ((0,), (0,))),
                                 preferred_element_type=f32)          # (H, TQ, dh)
        return m_new, l_new, alpha * acc_prev + pv

    init = (jnp.full((H, TQ, 1), -jnp.inf, f32),
            jnp.zeros((H, TQ, 1), f32),
            jnp.zeros((H, TQ, dh), f32))
    if n_ktiles == 1:
        _, l_i, acc = attend(0, init)                  # static slices
    else:
        _, l_i, acc = jax.lax.fori_loop(0, n_ktiles, attend, init)

    o = acc * pl.reciprocal(l_i, approx=True)          # (H, TQ, dh), EUP divide
    # Head merge (lane concat) + ONE full-K output projection (fills the MXU
    # K dimension instead of H separate dh-deep contractions).
    o_m = jnp.concatenate([o[h] for h in range(H)], axis=-1)          # (TQ, D)
    attn = jnp.dot(o_m.astype(bf16), wo_ref[...], preferred_element_type=f32) + bo_ref[...]

    # TODO(synk): dropout_1 / FFN dropout are identity (eval mode); train-mode
    # stochastic dropout is not reproduced.
    y = xq + inv_nl * attn

    # ---- FFN branch ----
    ln2 = _layernorm(y, g2_ref[...], b2_ref[...])
    h1 = jnp.dot(ln2.astype(bf16), wf1_ref[...], preferred_element_type=f32) + bf1_ref[...]
    h1 = jax.nn.gelu(h1, approximate=False)            # exact erf = torch nn.GELU() default
    f = jnp.dot(h1.astype(bf16), wf2_ref[...], preferred_element_type=f32) + bf2_ref[...]
    z_ref[0] = (y + inv_nl * f).astype(z_ref.dtype)


# --------------------------------------------------------------------------
# Wrapper
# --------------------------------------------------------------------------
def _vmem_budget_bytes():
    try:
        cap = int(pltpu.get_tpu_info().vmem_capacity_bytes)
    except Exception:
        cap = 64 * 1024 * 1024
    # ~75% of physical VMEM: headroom for Mosaic internal scratch / pipeline bufs.
    return min(cap * 3 // 4, 100 * 1024 * 1024)


def decoder_layer(x, valid_lens, params, *, n_heads, n_layers,
                  q_tile=None, k_tile=None):
    B, S, D = x.shape
    F = params["wf1"].shape[1]
    assert D % n_heads == 0
    dh = D // n_heads
    f32, bf16 = jnp.float32, jnp.bfloat16

    vmem_limit = _vmem_budget_bytes()
    big_vmem = vmem_limit >= (72 << 20)        # v5e / v6e (128 MiB parts)

    if q_tile is None:
        q_target = 256 if big_vmem else 128    # bigger M tiles where VMEM allows
        q_tile = S if S <= q_target else q_target
    assert S % q_tile == 0
    n_qt = S // q_tile

    if k_tile is None:
        k_target = 512 if big_vmem else 256
        k_tile = S if S <= k_target else k_target
    assert S % k_tile == 0
    n_kt = S // k_tile

    # Matmul weights to bf16 (halves DMA + VMEM residency); biases / LN stay f32.
    wq = params["wq"].astype(bf16)
    wk = params["wk"].astype(bf16)
    wv = params["wv"].astype(bf16)
    wo = params["wo"].astype(bf16)
    wf1 = params["wf1"].astype(bf16)
    wf2 = params["wf2"].astype(bf16)

    # int8 mask: 4x less HBM->VMEM traffic than f32.  (Module contract is an
    # arbitrary (B, S, S) retain-mask, so it cannot be reduced to lengths.)
    if valid_lens is None:
        mask8 = jnp.ones((B, S, S), jnp.int8)
    else:
        mask8 = (valid_lens.astype(f32) > 0.5).astype(jnp.int8)

    def _const_spec(shape, single_buffer):
        idx = lambda *_ij, _nd=len(shape): (0,) * _nd
        if single_buffer and hasattr(pl, "Buffered"):
            try:  # constant index map -> double buffering is pure VMEM waste
                return pl.BlockSpec(shape, idx, pipeline_mode=pl.Buffered(1))
            except TypeError:
                pass
        return pl.BlockSpec(shape, idx)

    def _forward(single_buffer):
        cs = lambda shape: _const_spec(shape, single_buffer)

        # ---- Pass 1: K / V projections, once per row (no per-q-tile recompute) ----
        kv_flops = int(2 * B * S * D * D * 2)
        kv_bytes = int(B * S * D * 4 + 2 * D * D * 2 + 2 * D * 4 + 2 * B * S * D * 2)
        k_flat, v_flat = pl.pallas_call(
            _kv_proj_kernel,
            out_shape=(jax.ShapeDtypeStruct((B, S, D), bf16),
                       jax.ShapeDtypeStruct((B, S, D), bf16)),
            grid_spec=pltpu.PrefetchScalarGridSpec(
                num_scalar_prefetch=0,
                grid=(B, n_qt),
                in_specs=[
                    pl.BlockSpec((1, q_tile, D), lambda b, i: (b, i, 0)),
                    cs((D, D)), cs((1, D)),          # W_k, b_k
                    cs((D, D)), cs((1, D)),          # W_v, b_v
                ],
                out_specs=(pl.BlockSpec((1, q_tile, D), lambda b, i: (b, i, 0)),
                           pl.BlockSpec((1, q_tile, D), lambda b, i: (b, i, 0))),
            ),
            compiler_params=pltpu.CompilerParams(
                dimension_semantics=("parallel", "parallel"),
                vmem_limit_bytes=vmem_limit),
            cost_estimate=pl.CostEstimate(flops=kv_flops, transcendentals=0,
                                          bytes_accessed=kv_bytes),
        )(x, wk, params["bk"], wv, params["bv"])

        # Head-split K / V in the wrapper (cheap XLA layout plumbing) so the
        # main kernel never relayouts them: (B, S, D) -> (B, H, S, dh), bf16.
        k_heads = k_flat.reshape(B, S, n_heads, dh).transpose(0, 2, 1, 3)
        v_heads = v_flat.reshape(B, S, n_heads, dh).transpose(0, 2, 1, 3)

        kernel = functools.partial(_decoder_layer_kernel, n_heads=n_heads,
                                   n_layers=n_layers, k_tile=k_tile, n_ktiles=n_kt)

        in_specs = [
            pl.BlockSpec((1, q_tile, D), lambda b, i: (b, i, 0)),           # x (query rows)
            pl.BlockSpec((1, n_heads, S, dh), lambda b, i: (b, 0, 0, 0)),   # K heads (bf16)
            pl.BlockSpec((1, n_heads, S, dh), lambda b, i: (b, 0, 0, 0)),   # V heads (bf16)
            pl.BlockSpec((1, q_tile, S), lambda b, i: (b, i, 0)),           # mask (int8)
            cs((1, D)), cs((1, D)),                                         # LN1 gamma, beta
            cs((D, D)), cs((1, D)),                                         # W_q, b_q
            cs((D, D)), cs((1, D)),                                         # W_o, b_o
            cs((1, D)), cs((1, D)),                                         # LN2 gamma, beta
            cs((D, F)), cs((1, F)),                                         # FFN linear 1
            cs((F, D)), cs((1, D)),                                         # FFN linear 2
        ]
        out_spec = pl.BlockSpec((1, q_tile, D), lambda b, i: (b, i, 0))

        # Advisory cost estimate (matches executed work now that K/V are hoisted).
        flops = int(2 * B * S * D * D                 # Q projection
                    + 2 * B * S * S * D * 2           # scores + PV (all heads)
                    + 2 * B * S * D * D               # output projection
                    + 2 * B * S * D * F * 2)          # FFN
        transcendentals = int(B * n_heads * S * S + B * S * F)
        bytes_accessed = int(B * S * D * 4 * 2 + 2 * B * S * D * 2 + B * S * S
                             + (2 * D * D + 2 * D * F) * 2 + (9 * D + F) * 4)

        out = pl.pallas_call(
            kernel,
            out_shape=jax.ShapeDtypeStruct((B, S, D), f32),
            grid_spec=pltpu.PrefetchScalarGridSpec(
                num_scalar_prefetch=0,
                grid=(B, n_qt),
                in_specs=in_specs,
                out_specs=out_spec,
            ),
            compiler_params=pltpu.CompilerParams(
                dimension_semantics=("parallel", "parallel"),
                vmem_limit_bytes=vmem_limit),
            cost_estimate=pl.CostEstimate(flops=flops, transcendentals=transcendentals,
                                          bytes_accessed=bytes_accessed),
        )(x, k_heads, v_heads, mask8,
          params["g1"], params["b1"], wq, params["bq"], wo, params["bo"],
          params["g2"], params["b2"], wf1, params["bf1"], wf2, params["bf2"])
        return out

    try:
        return jax.block_until_ready(_forward(single_buffer=True))
    except Exception:
        # Fallback if pipeline_mode=pl.Buffered(1) is rejected on this jax build.
        return jax.block_until_ready(_forward(single_buffer=False))


# --------------------------------------------------------------------------
# Pure-JAX f32 reference mirroring the PyTorch forward (eval mode)
# --------------------------------------------------------------------------
def ref_forward(x, valid_lens, p, n_heads, n_layers):
    B, S, D = x.shape
    dh = D // n_heads

    def ln(t, g, b):
        mu = t.mean(-1, keepdims=True)
        var = ((t - mu) ** 2).mean(-1, keepdims=True)
        return (t - mu) / jnp.sqrt(var + 1e-5) * g + b

    ln1 = ln(x, p["g1"], p["b1"])
    q = ln1 @ p["wq"] + p["bq"]
    k = x @ p["wk"] + p["bk"]
    v = x @ p["wv"] + p["bv"]
    q = q.reshape(B, S, n_heads, dh).transpose(0, 2, 1, 3)
    k = k.reshape(B, S, n_heads, dh).transpose(0, 2, 1, 3)
    v = v.reshape(B, S, n_heads, dh).transpose(0, 2, 1, 3)
    s = jnp.einsum("bhqd,bhkd->bhqk", q, k) / math.sqrt(dh)
    s = jnp.where(valid_lens[:, None] > 0.5, s, -jnp.inf)
    attn = jax.nn.softmax(s, axis=-1)
    o = jnp.einsum("bhqk,bhkd->bhqd", attn, v)
    o = o.transpose(0, 2, 1, 3).reshape(B, S, D)
    o = o @ p["wo"] + p["bo"]
    y = x + o / math.sqrt(n_layers)
    ln2 = ln(y, p["g2"], p["b2"])
    h = jax.nn.gelu(ln2 @ p["wf1"] + p["bf1"], approximate=False)
    f = h @ p["wf2"] + p["bf2"]
    return y + f / math.sqrt(n_layers)


if __name__ == "__main__":
    # Small, TPU-friendly sizes consistent with the module.
    B, S, D, H, F, NL = 2, 8, 32, 4, 64, 2

    key = jax.random.PRNGKey(0)
    ks = jax.random.split(key, 16)

    def w(k, shape):
        return (0.02 * jax.random.normal(k, shape)).astype(jnp.float32)

    params = {
        "g1": jnp.ones((1, D), jnp.float32),  "b1": jnp.zeros((1, D), jnp.float32),
        "wq": w(ks[0], (D, D)), "bq": w(ks[1], (1, D)),
        "wk": w(ks[2], (D, D)), "bk": w(ks[3], (1, D)),
        "wv": w(ks[4], (D, D)), "bv": w(ks[5], (1, D)),
        "wo": w(ks[6], (D, D)), "bo": w(ks[7], (1, D)),
        "g2": jnp.ones((1, D), jnp.float32),  "b2": jnp.zeros((1, D), jnp.float32),
        "wf1": w(ks[8], (D, F)), "bf1": w(ks[9], (1, F)),
        "wf2": w(ks[10], (F, D)), "bf2": w(ks[11], (1, D)),
    }

    x = jax.random.normal(ks[12], (B, S, D), dtype=jnp.float32)
    # valid_lens: (B, S, S), 1 = retain, 0 = mask (causal mask for the decoder).
    valid_lens = jnp.broadcast_to(
        jnp.tril(jnp.ones((S, S), jnp.float32)), (B, S, S)
    ).astype(jnp.float32)

    out = decoder_layer(x, valid_lens, params, n_heads=H, n_layers=NL)
    out = jax.block_until_ready(out)

    ref = ref_forward(x, valid_lens, params, H, NL)
    assert out.shape == (B, S, D)
    # bf16 MXU operands + approx reciprocal vs. the f32 reference -> looser tol.
    assert jnp.allclose(out, ref, atol=2e-2, rtol=2e-2), float(
        jnp.max(jnp.abs(out - ref))
    )
    print("KERNEL_OK")
</pallas_src>

<mosaic_0001>
module attributes {stable_mosaic.version = 11 : i64} {
  func.func @_kv_proj_kernel(%arg0: i32, %arg1: i32, %arg2: memref<1x8x32xf32, #tpu.memory_space<vmem>>, %arg3: memref<32x32xbf16, #tpu.memory_space<vmem>>, %arg4: memref<1x32xf32, #tpu.memory_space<vmem>>, %arg5: memref<32x32xbf16, #tpu.memory_space<vmem>>, %arg6: memref<1x32xf32, #tpu.memory_space<vmem>>, %arg7: memref<1x8x32xbf16, #tpu.memory_space<vmem>>, %arg8: memref<1x8x32xbf16, #tpu.memory_space<vmem>>) attributes {dimension_semantics = [#tpu.dimension_semantics<parallel>, #tpu.dimension_semantics<parallel>], iteration_bounds = array<i64: 2, 1>, scalar_prefetch = 0 : i64, scratch_operands = 0 : i64, tpu.core_type = #tpu.core_type<tc>, window_params = [{transform_indices = @transform_0, window_bounds = array<i64: 1, 8, 32>}, {pipeline_mode = #tpu.pipeline_mode<synchronous>, transform_indices = @transform_1, window_bounds = array<i64: 32, 32>}, {pipeline_mode = #tpu.pipeline_mode<synchronous>, transform_indices = @transform_2, window_bounds = array<i64: 1, 32>}, {pipeline_mode = #tpu.pipeline_mode<synchronous>, transform_indices = @transform_3, window_bounds = array<i64: 32, 32>}, {pipeline_mode = #tpu.pipeline_mode<synchronous>, transform_indices = @transform_4, window_bounds = array<i64: 1, 32>}, {transform_indices = @transform_5, window_bounds = array<i64: 1, 8, 32>}, {transform_indices = @transform_6, window_bounds = array<i64: 1, 8, 32>}]} {
    %c0 = arith.constant 0 : index
    %c0_0 = arith.constant 0 : index
    %c0_1 = arith.constant 0 : index
    %0 = vector.load %arg2[%c0, %c0_0, %c0_1] : memref<1x8x32xf32, #tpu.memory_space<vmem>>, vector<1x8x32xf32>
    %1 = vector.shape_cast %0 : vector<1x8x32xf32> to vector<8x32xf32>
    %2 = arith.truncf %1 : vector<8x32xf32> to vector<8x32xbf16>
    %c0_2 = arith.constant 0 : index
    %c0_3 = arith.constant 0 : index
    %3 = vector.load %arg3[%c0_2, %c0_3] : memref<32x32xbf16, #tpu.memory_space<vmem>>, vector<32x32xbf16>
    %cst = arith.constant dense<0.000000e+00> : vector<8x32xf32>
    %4 = tpu.matmul %2, %3, %cst {dimension_numbers = #tpu.dot_dimension_numbers<[1], [0], [0], [1], [0, 0, 1, 1], [], []>} : vector<8x32xbf16>, vector<32x32xbf16>, vector<8x32xf32> -> vector<8x32xf32>
    %c0_4 = arith.constant 0 : index
    %c0_5 = arith.constant 0 : index
    %5 = vector.load %arg4[%c0_4, %c0_5] : memref<1x32xf32, #tpu.memory_space<vmem>>, vector<1x32xf32>
    %6 = vector.broadcast %5 : vector<1x32xf32> to vector<8x32xf32>
    %7 = arith.addf %4, %6 : vector<8x32xf32>
    %c0_6 = arith.constant 0 : index
    %c0_7 = arith.constant 0 : index
    %8 = vector.load %arg5[%c0_6, %c0_7] : memref<32x32xbf16, #tpu.memory_space<vmem>>, vector<32x32xbf16>
    %cst_8 = arith.constant dense<0.000000e+00> : vector<8x32xf32>
    %9 = tpu.matmul %2, %8, %cst_8 {dimension_numbers = #tpu.dot_dimension_numbers<[1], [0], [0], [1], [0, 0, 1, 1], [], []>} : vector<8x32xbf16>, vector<32x32xbf16>, vector<8x32xf32> -> vector<8x32xf32>
    %c0_9 = arith.constant 0 : index
    %c0_10 = arith.constant 0 : index
    %10 = vector.load %arg6[%c0_9, %c0_10] : memref<1x32xf32, #tpu.memory_space<vmem>>, vector<1x32xf32>
    %11 = vector.broadcast %10 : vector<1x32xf32> to vector<8x32xf32>
    %12 = arith.addf %9, %11 : vector<8x32xf32>
    %13 = arith.truncf %7 : vector<8x32xf32> to vector<8x32xbf16>
    %c0_11 = arith.constant 0 : index
    %c0_12 = arith.constant 0 : index
    %c0_13 = arith.constant 0 : index
    %14 = vector.load %arg7[%c0_11, %c0_12, %c0_13] : memref<1x8x32xbf16, #tpu.memory_space<vmem>>, vector<1x8x32xbf16>
    %15 = vector.shape_cast %14 : vector<1x8x32xbf16> to vector<8x32xbf16>
    %16 = vector.shape_cast %13 : vector<8x32xbf16> to vector<1x8x32xbf16>
    tpu.vector_store %arg7[%c0_11, %c0_12, %c0_13], %16 {strides = array<i32>} : memref<1x8x32xbf16, #tpu.memory_space<vmem>>, vector<1x8x32xbf16>,
    %17 = arith.truncf %12 : vector<8x32xf32> to vector<8x32xbf16>
    %c0_14 = arith.constant 0 : index
    %c0_15 = arith.constant 0 : index
    %c0_16 = arith.constant 0 : index
    %18 = vector.load %arg8[%c0_14, %c0_15, %c0_16] : memref<1x8x32xbf16, #tpu.memory_space<vmem>>, vector<1x8x32xbf16>
    %19 = vector.shape_cast %18 : vector<1x8x32xbf16> to vector<8x32xbf16>
    %20 = vector.shape_cast %17 : vector<8x32xbf16> to vector<1x8x32xbf16>
    tpu.vector_store %arg8[%c0_14, %c0_15, %c0_16], %20 {strides = array<i32>} : memref<1x8x32xbf16, #tpu.memory_space<vmem>>, vector<1x8x32xbf16>,
    return
  }
  func.func @transform_0(%arg0: i32, %arg1: i32) -> (i32, i32, i32) {
    %c0_i32 = arith.constant 0 : i32
    %c0_i32_0 = arith.constant 0 : i32
    return %arg0, %arg1, %c0_i32 : i32, i32, i32
  }
  func.func @transform_1(%arg0: i32, %arg1: i32) -> (i32, i32) {
    %c0_i32 = arith.constant 0 : i32
    %c0_i32_0 = arith.constant 0 : i32
    %c0_i32_1 = arith.constant 0 : i32
    return %c0_i32, %c0_i32_0 : i32, i32
  }
  func.func @transform_2(%arg0: i32, %arg1: i32) -> (i32, i32) {
    %c0_i32 = arith.constant 0 : i32
    %c0_i32_0 = arith.constant 0 : i32
    %c0_i32_1 = arith.constant 0 : i32
    return %c0_i32, %c0_i32_0 : i32, i32
  }
  func.func @transform_3(%arg0: i32, %arg1: i32) -> (i32, i32) {
    %c0_i32 = arith.constant 0 : i32
    %c0_i32_0 = arith.constant 0 : i32
    %c0_i32_1 = arith.constant 0 : i32
    return %c0_i32, %c0_i32_0 : i32, i32
  }
  func.func @transform_4(%arg0: i32, %arg1: i32) -> (i32, i32) {
    %c0_i32 = arith.constant 0 : i32
    %c0_i32_0 = arith.constant 0 : i32
    %c0_i32_1 = arith.constant 0 : i32
    return %c0_i32, %c0_i32_0 : i32, i32
  }
  func.func @transform_5(%arg0: i32, %arg1: i32) -> (i32, i32, i32) {
    %c0_i32 = arith.constant 0 : i32
    %c0_i32_0 = arith.constant 0 : i32
    return %arg0, %arg1, %c0_i32 : i32, i32, i32
  }
  func.func @transform_6(%arg0: i32, %arg1: i32) -> (i32, i32, i32) {
    %c0_i32 = arith.constant 0 : i32
    %c0_i32_0 = arith.constant 0 : i32
    return %arg0, %arg1, %c0_i32 : i32, i32, i32
  }
}

module attributes {stable_mosaic.version = 11 : i64} {
  func.func @_kv_proj_kernel(%arg0: i32, %arg1: i32, %arg2: memref<1x8x32xf32, #tpu.memory_space<vmem>>, %arg3: memref<32x32xbf16, #tpu.memory_space<vmem>>, %arg4: memref<1x32xf32, #tpu.memory_space<vmem>>, %arg5: memref<32x32xbf16, #tpu.memory_space<vmem>>, %arg6: memref<1x32xf32, #tpu.memory_space<vmem>>, %arg7: memref<1x8x32xbf16, #tpu.memory_space<vmem>>, %arg8: memref<1x8x32xbf16, #tpu.memory_space<vmem>>) attributes {dimension_semantics = [#tpu.dimension_semantics<parallel>, #tpu.dimension_semantics<parallel>], iteration_bounds = array<i64: 2, 1>, scalar_prefetch = 0 : i64, scratch_operands = 0 : i64, tpu.core_type = #tpu.core_type<tc>, window_params = [{transform_indices = @transform_0, window_bounds = array<i64: 1, 8, 32>}, {pipeline_mode = #tpu.pipeline_mode<synchronous>, transform_indices = @transform_1, window_bounds = array<i64: 32, 32>}, {pipeline_mode = #tpu.pipeline_mode<synchronous>, transform_indices = @transform_2, window_bounds = array<i64: 1, 32>}, {pipeline_mode = #tpu.pipeline_mode<synchronous>, transform_indices = @transform_3, window_bounds = array<i64: 32, 32>}, {pipeline_mode = #tpu.pipeline_mode<synchronous>, transform_indices = @transform_4, window_bounds = array<i64: 1, 32>}, {transform_indices = @transform_5, window_bounds = array<i64: 1, 8, 32>}, {transform_indices = @transform_6, window_bounds = array<i64: 1, 8, 32>}]} {
    %c0 = arith.constant 0 : index
    %c0_0 = arith.constant 0 : index
    %c0_1 = arith.constant 0 : index
    %0 = vector.load %arg2[%c0, %c0_0, %c0_1] : memref<1x8x32xf32, #tpu.memory_space<vmem>>, vector<1x8x32xf32>
    %1 = vector.shape_cast %0 : vector<1x8x32xf32> to vector<8x32xf32>
    %2 = arith.truncf %1 : vector<8x32xf32> to vector<8x32xbf16>
    %c0_2 = arith.constant 0 : index
    %c0_3 = arith.constant 0 : index
    %3 = vector.load %arg3[%c0_2, %c0_3] : memref<32x32xbf16, #tpu.memory_space<vmem>>, vector<32x32xbf16>
    %cst = arith.constant dense<0.000000e+00> : vector<8x32xf32>
    %4 = tpu.matmul %2, %3, %cst {dimension_numbers = #tpu.dot_dimension_numbers<[1], [0], [0], [1], [0, 0, 1, 1], [], []>} : vector<8x32xbf16>, vector<32x32xbf16>, vector<8x32xf32> -> vector<8x32xf32>
    %c0_4 = arith.constant 0 : index
    %c0_5 = arith.constant 0 : index
    %5 = vector.load %arg4[%c0_4, %c0_5] : memref<1x32xf32, #tpu.memory_space<vmem>>, vector<1x32xf32>
    %6 = vector.broadcast %5 : vector<1x32xf32> to vector<8x32xf32>
    %7 = arith.addf %4, %6 : vector<8x32xf32>
    %c0_6 = arith.constant 0 : index
    %c0_7 = arith.constant 0 : index
    %8 = vector.load %arg5[%c0_6, %c0_7] : memref<32x32xbf16, #tpu.memory_space<vmem>>, vector<32x32xbf16>
    %cst_8 = arith.constant dense<0.000000e+00> : vector<8x32xf32>
    %9 = tpu.matmul %2, %8, %cst_8 {dimension_numbers = #tpu.dot_dimension_numbers<[1], [0], [0], [1], [0, 0, 1, 1], [], []>} : vector<8x32xbf16>, vector<32x32xbf16>, vector<8x32xf32> -> vector<8x32xf32>
    %c0_9 = arith.constant 0 : index
    %c0_10 = arith.constant 0 : index
    %10 = vector.load %arg6[%c0_9, %c0_10] : memref<1x32xf32, #tpu.memory_space<vmem>>, vector<1x32xf32>
    %11 = vector.broadcast %10 : vector<1x32xf32> to vector<8x32xf32>
    %12 = arith.addf %9, %11 : vector<8x32xf32>
    %13 = arith.truncf %7 : vector<8x32xf32> to vector<8x32xbf16>
    %c0_11 = arith.constant 0 : index
    %c0_12 = arith.constant 0 : index
    %c0_13 = arith.constant 0 : index
    %14 = vector.load %arg7[%c0_11, %c0_12, %c0_13] : memref<1x8x32xbf16, #tpu.memory_space<vmem>>, vector<1x8x32xbf16>
    %15 = vector.shape_cast %14 : vector<1x8x32xbf16> to vector<8x32xbf16>
    %16 = vector.shape_cast %13 : vector<8x32xbf16> to vector<1x8x32xbf16>
    tpu.vector_store %arg7[%c0_11, %c0_12, %c0_13], %16 {strides = array<i32>} : memref<1x8x32xbf16, #tpu.memory_space<vmem>>, vector<1x8x32xbf16>,
    %17 = arith.truncf %12 : vector<8x32xf32> to vector<8x32xbf16>
    %c0_14 = arith.constant 0 : index
    %c0_15 = arith.constant 0 : index
    %c0_16 = arith.constant 0 : index
    %18 = vector.load %arg8[%c0_14, %c0_15, %c0_16] : memref<1x8x32xbf16, #tpu.memory_space<vmem>>, vector<1x8x32xbf16>
    %19 = vector.shape_cast %18 : vector<1x8x32xbf16> to vector<8x32xbf16>
    %20 = vector.shape_cast %17 : vector<8x32xbf16> to vector<1x8x32xbf16>
    tpu.vector_store %arg8[%c0_14, %c0_15, %c0_16], %20 {strides = array<i32>} : memref<1x8x32xbf16, #tpu.memory_space<vmem>>, vector<1x8x32xbf16>,
    return
  }
  func.func @transform_0(%arg0: i32, %arg1: i32) -> (i32, i32, i32) {
    %c0_i32 = arith.constant 0 : i32
    %c0_i32_0 = arith.constant 0 : i32
    return %arg0, %arg1, %c0_i32 : i32, i32, i32
  }
  func.func @transform_1(%arg0: i32, %arg1: i32) -> (i32, i32) {
    %c0_i32 = arith.constant 0 : i32
    %c0_i32_0 = arith.constant 0 : i32
    %c0_i32_1 = arith.constant 0 : i32
    return %c0_i32, %c0_i32_0 : i32, i32
  }
  func.func @transform_2(%arg0: i32, %arg1: i32) -> (i32, i32) {
    %c0_i32 = arith.constant 0 : i32
    %c0_i32_0 = arith.constant 0 : i32
    %c0_i32_1 = arith.constant 0 : i32
    return %c0_i32, %c0_i32_0 : i32, i32
  }
  func.func @transform_3(%arg0: i32, %arg1: i32) -> (i32, i32) {
    %c0_i32 = arith.constant 0 : i32
    %c0_i32_0 = arith.constant 0 : i32
    %c0_i32_1 = arith.constant 0 : i32
    return %c0_i32, %c0_i32_0 : i32, i32
  }
  func.func @transform_4(%arg0: i32, %arg1: i32) -> (i32, i32) {
    %c0_i32 = arith.constant 0 : i32
    %c0_i32_0 = arith.constant 0 : i32
    %c0_i32_1 = arith.constant 0 : i32
    return %c0_i32, %c0_i32_0 : i32, i32
  }
  func.func @transform_5(%arg0: i32, %arg1: i32) -> (i32, i32, i32) {
    %c0_i32 = arith.constant 0 : i32
    %c0_i32_0 = arith.constant 0 : i32
    return %arg0, %arg1, %c0_i32 : i32, i32, i32
  }
  func.func @transform_6(%arg0: i32, %arg1: i32) -> (i32, i32, i32) {
    %c0_i32 = arith.constant 0 : i32
    %c0_i32_0 = arith.constant 0 : i32
    return %arg0, %arg1, %c0_i32 : i32, i32, i32
  }
}

</mosaic_0001>

<llo_original>
// kernel: tpu_custom_call.1
$region0: #{tpu_custom_call.1}
  #allocation0 [shape = 'u32[]', space=smem, size = 0x4, offset = 0x4, fixed_abs, tag = 'smem constant byte address 0x4 - core index']
  #allocation1 [shape = 'u32[72,128]{1,0:T(1,128)}', space=vmem, size = 0x9000, scoped, tag = 'internal scratch']
  %s0 = inlined_call_operand.hbm [shape: f32[2,8,32], index: 0, kind: input, shape index: {}]
  %s1 = inlined_call_operand.hbm [shape: bf16[32,32], index: 1, kind: input, shape index: {}]
  %s2 = inlined_call_operand.vmem [shape: f32[1,32], index: 2, kind: input, shape index: {}]
  %s3 = inlined_call_operand.hbm [shape: bf16[32,32], index: 3, kind: input, shape index: {}]
  %s4 = inlined_call_operand.vmem [shape: f32[1,32], index: 4, kind: input, shape index: {}]
  %s5 = inlined_call_operand.hbm [shape: bf16[2,8,32], index: 5, kind: output, shape index: {0}]
  %s6 = inlined_call_operand.hbm [shape: bf16[2,8,32], index: 6, kind: output, shape index: {1}]
  %7 = xla_tuple %s5, %s6
  %s8 = sld [smem:[#allocation0]]
  $region73: #{tpu_custom_call.1} parent=0
    _
  %s10 = ssub.s32 1, %s8
  %s11 = scalar_select 0, %s10, %s8
  $region1: #{tpu_custom_call.1} parent=0
    #allocation2 [shape = 'u8[8192]{0}', space=vmem, size = 0x2000, scoped, tag = 'input window, operand 0']
    #allocation3 [shape = 's32[2]{0}', space=sflag, size = 0x8, scoped, tag = 'scoped memory for tpu_custom_call.1']
    #allocation4 [shape = 's32[2]{0}', space=sflag, size = 0x8, scoped, tag = 'scoped memory for tpu_custom_call.1']
    #allocation5 [shape = 'u8[8192]{0}', space=vmem, size = 0x2000, scoped, tag = 'input window, operand 1, single buffered']
    #allocation6 [shape = 's32[1]{0}', space=sflag, size = 0x4, scoped, tag = 'scoped memory for tpu_custom_call.1']
    #allocation7 [shape = 'u8[8192]{0}', space=vmem, size = 0x2000, scoped, tag = 'input window, operand 3, single buffered']
    #allocation8 [shape = 'u8[4096]{0}', space=vmem, size = 0x1000, scoped, tag = 'output window, operand 0']
    #allocation9 [shape = 'u8[4096]{0}', space=vmem, size = 0x1000, scoped, tag = 'output window, operand 1']
    #allocation10 [shape = 's32[2]{0}', space=sflag, size = 0x8, scoped, tag = 'scoped memory for tpu_custom_call.1']
    %12 = vsyncpa [#allocation3], 0
    %s13 = scalar_lea.sflag [#allocation3], 1
    %14 = vsyncpa %s13, 0
    %15 = vsyncpa [#allocation6], 0
    %16 = vsyncpa [#allocation4], 0
    %s17 = scalar_lea.sflag [#allocation4], 1
    %18 = vsyncpa %s17, 0
    %19 = vsyncpa [#allocation10], 0
    %s20 = scalar_lea.sflag [#allocation10], 1
    %21 = vsyncpa %s20, 0
    loop: start=0, step=1, limit=4
    $region2: #{tpu_custom_call.1} parent=1 // loop_pre_header
      _
    $region3: #{tpu_custom_call.1} parent=1 // loop_header
      %s23 = sphi 0, %s27
      %p24 = scmp.ge.s32.totalorder %s23, 4
      %s30 = sphi 0, %s42
      %s31 = sphi 0, %s38
      %s32 = sphi 0, %s30
      %s33 = sphi 0, %s31
      %s34 = sphi 0, %s32
      %s35 = sphi 0, %s33
      %s47 = sphi 0, %s49
      %s50 = sphi 0, %s47
      %s51 = sphi 0, %s50
      %s67 = sphi 0, %s51
      %s71 = sphi 0, %s71
      %s73 = sphi 0, %s71
      %s74 = sphi 0, %s73
      %s88 = sphi 0, %s74
      %s92 = sphi 0, %s92
      %s94 = sphi 0, %s92
      %s95 = sphi 0, %s94
      %s109 = sphi 0, %s95
      %s113 = sphi 0, %s113
      %s115 = sphi 0, %s113
      %s116 = sphi 0, %s115
      %s130 = sphi 0, %s116
      %s134 = sphi 0, %s134
      %s136 = sphi 0, %s134
      %s137 = sphi 0, %s136
      %s151 = sphi 0, %s137
      %s159 = sphi 0, %s161
      %s162 = sphi 0, %s159
      %s163 = sphi 0, %s162
      %s179 = sphi 0, %s163
      %s187 = sphi 0, %s189
      %s190 = sphi 0, %s187
      %s191 = sphi 0, %s190
      %s207 = sphi 0, %s191
    $region4: #{tpu_custom_call.1} parent=1 // loop_header_branch
      %26 = sbr.rel (%p24) target = $region8
    $region5: #{tpu_custom_call.1} parent=1 // loop_body
      %s28 = ssub.s32 %s23, 1
      %s29 = ssub.s32 %s23, 2
      %s36 = sadd.s32 1, %s31
      %p37 = scmp.ge.s32.totalorder %s36, 1
      %s38 = scalar_select %p37, 0, %s36
      %s39 = sadd.s32 1, %s30
      %s40 = scalar_select %p37, %s39, %s30
      %p41 = scmp.ge.s32.totalorder %s40, 2
      %s42 = scalar_select %p41, 0, %s40
      %s43 = ssub.s32 %s30, %s42
      %s44 = ssub.s32 %s31, %s38
      %s45 = sor.u32 %s43, %s44
      %p46 = scmp.eq.s32.totalorder %s45, 0
      %s48 = sadd.s32 %s47, 1
      %s49 = scalar_select %p46, %s47, %s48
      %p52 = pneg %p46
      %p53 = scmp.eq.s32.totalorder %s23, 1
      %p54 = por %p52, %p53
      %p55 = scmp.ne.s32.totalorder %s47, %s50
      %p56 = scmp.eq.s32.totalorder %s23, 0
      %p57 = por %p55, %p56
      %p58 = scmp.ne.s32.totalorder %s47, %s50
      %p59 = scmp.eq.s32.totalorder %s28, 1
      %p60 = por %p58, %p59
      %p61 = scmp.ne.s32.totalorder %s50, %s51
      %p62 = scmp.eq.s32.totalorder %s28, 0
      %p63 = por %p61, %p62
      %p64 = scmp.ne.s32.totalorder %s50, %s51
      %p65 = scmp.eq.s32.totalorder %s29, 1
      %p66 = por %p64, %p65
      %p68 = scmp.ne.s32.totalorder %s51, %s67
      %p69 = scmp.eq.s32.totalorder %s29, 0
      %p70 = por %p68, %p69
      %s72 = sadd.s32 %s71, 1
      %p75 = scmp.eq.s32.totalorder %s23, 1
      %p76 = scmp.ne.s32.totalorder %s71, %s73
      %p77 = scmp.eq.s32.totalorder %s23, 0
      %p78 = por %p76, %p77
      %p79 = scmp.ne.s32.totalorder %s71, %s73
      %p80 = scmp.eq.s32.totalorder %s28, 1
      %p81 = por %p79, %p80
      %p82 = scmp.ne.s32.totalorder %s73, %s74
      %p83 = scmp.eq.s32.totalorder %s28, 0
      %p84 = por %p82, %p83
      %p85 = scmp.ne.s32.totalorder %s73, %s74
      %p86 = scmp.eq.s32.totalorder %s29, 1
      %p87 = por %p85, %p86
      %p89 = scmp.ne.s32.totalorder %s74, %s88
      %p90 = scmp.eq.s32.totalorder %s29, 0
      %p91 = por %p89, %p90
      %s93 = sadd.s32 %s92, 1
      %p96 = scmp.eq.s32.totalorder %s23, 1
      %p97 = scmp.ne.s32.totalorder %s92, %s94
      %p98 = scmp.eq.s32.totalorder %s23, 0
      %p99 = por %p97, %p98
      %p100 = scmp.ne.s32.totalorder %s92, %s94
      %p101 = scmp.eq.s32.totalorder %s28, 1
      %p102 = por %p100, %p101
      %p103 = scmp.ne.s32.totalorder %s94, %s95
      %p104 = scmp.eq.s32.totalorder %s28, 0
      %p105 = por %p103, %p104
      %p106 = scmp.ne.s32.totalorder %s94, %s95
      %p107 = scmp.eq.s32.totalorder %s29, 1
      %p108 = por %p106, %p107
      %p110 = scmp.ne.s32.totalorder %s95, %s109
      %p111 = scmp.eq.s32.totalorder %s29, 0
      %p112 = por %p110, %p111
      %s114 = sadd.s32 %s113, 1
      %p117 = scmp.eq.s32.totalorder %s23, 1
      %p118 = scmp.ne.s32.totalorder %s113, %s115
      %p119 = scmp.eq.s32.totalorder %s23, 0
      %p120 = por %p118, %p119
      %p121 = scmp.ne.s32.totalorder %s113, %s115
      %p122 = scmp.eq.s32.totalorder %s28, 1
      %p123 = por %p121, %p122
      %p124 = scmp.ne.s32.totalorder %s115, %s116
      %p125 = scmp.eq.s32.totalorder %s28, 0
      %p126 = por %p124, %p125
      %p127 = scmp.ne.s32.totalorder %s115, %s116
      %p128 = scmp.eq.s32.totalorder %s29, 1
      %p129 = por %p127, %p128
      %p131 = scmp.ne.s32.totalorder %s116, %s130
      %p132 = scmp.eq.s32.totalorder %s29, 0
      %p133 = por %p131, %p132
      %s135 = sadd.s32 %s134, 1
      %p138 = scmp.eq.s32.totalorder %s23, 1
      %p139 = scmp.ne.s32.totalorder %s134, %s136
      %p140 = scmp.eq.s32.totalorder %s23, 0
      %p141 = por %p139, %p140
      %p142 = scmp.ne.s32.totalorder %s134, %s136
      %p143 = scmp.eq.s32.totalorder %s28, 1
      %p144 = por %p142, %p143
      %p145 = scmp.ne.s32.totalorder %s136, %s137
      %p146 = scmp.eq.s32.totalorder %s28, 0
      %p147 = por %p145, %p146
      %p148 = scmp.ne.s32.totalorder %s136, %s137
      %p149 = scmp.eq.s32.totalorder %s29, 1
      %p150 = por %p148, %p149
      %p152 = scmp.ne.s32.totalorder %s137, %s151
      %p153 = scmp.eq.s32.totalorder %s29, 0
      %p154 = por %p152, %p153
      %s155 = ssub.s32 %s30, %s42
      %s156 = ssub.s32 %s31, %s38
      %s157 = sor.u32 %s155, %s156
      %p158 = scmp.eq.s32.totalorder %s157, 0
      %s160 = sadd.s32 %s159, 1
      %s161 = scalar_select %p158, %s159, %s160
      %p164 = pneg %p158
      %p165 = scmp.eq.s32.totalorder %s23, 1
      %p166 = por %p164, %p165
      %p167 = scmp.ne.s32.totalorder %s159, %s162
      %p168 = scmp.eq.s32.totalorder %s23, 0
      %p169 = por %p167, %p168
      %p170 = scmp.ne.s32.totalorder %s159, %s162
      %p171 = scmp.eq.s32.totalorder %s28, 1
      %p172 = por %p170, %p171
      %p173 = scmp.ne.s32.totalorder %s162, %s163
      %p174 = scmp.eq.s32.totalorder %s28, 0
      %p175 = por %p173, %p174
      %p176 = scmp.ne.s32.totalorder %s162, %s163
      %p177 = scmp.eq.s32.totalorder %s29, 1
      %p178 = por %p176, %p177
      %p180 = scmp.ne.s32.totalorder %s163, %s179
      %p181 = scmp.eq.s32.totalorder %s29, 0
      %p182 = por %p180, %p181
      %s183 = ssub.s32 %s30, %s42
      %s184 = ssub.s32 %s31, %s38
      %s185 = sor.u32 %s183, %s184
      %p186 = scmp.eq.s32.totalorder %s185, 0
      %s188 = sadd.s32 %s187, 1
      %s189 = scalar_select %p186, %s187, %s188
      %p192 = pneg %p186
      %p193 = scmp.eq.s32.totalorder %s23, 1
      %p194 = por %p192, %p193
      %p195 = scmp.ne.s32.totalorder %s187, %s190
      %p196 = scmp.eq.s32.totalorder %s23, 0
      %p197 = por %p195, %p196
      %p198 = scmp.ne.s32.totalorder %s187, %s190
      %p199 = scmp.eq.s32.totalorder %s28, 1
      %p200 = por %p198, %p199
      %p201 = scmp.ne.s32.totalorder %s190, %s191
      %p202 = scmp.eq.s32.totalorder %s28, 0
      %p203 = por %p201, %p202
      %p204 = scmp.ne.s32.totalorder %s190, %s191
      %p205 = scmp.eq.s32.totalorder %s29, 1
      %p206 = por %p204, %p205
      %p208 = scmp.ne.s32.totalorder %s191, %s207
      %p209 = scmp.eq.s32.totalorder %s29, 0
      %p210 = por %p208, %p209
      %p211 = scmp.le.s32.totalorder 1, %s23
      %p212 = scmp.lt.s32.totalorder %s23, 3
      %p213 = pnand %p211, %p212
      %p214 = pneg %p213
      // Predicated region
      $region9: #{tpu_custom_call.1} parent=5 // pred_check
        _
      $region10: #{tpu_custom_call.1} parent=5 // pred_check_branch
        %216 = sbr.rel (%p213) target = $region12
      $region11: #{tpu_custom_call.1} parent=5 // pred_region
        %s217 = ssub.s32 %s23, 1
        // Predicated region
        $region13: #{tpu_custom_call.1} parent=11 // pred_check
          %p218 = pneg %p84
        $region14: #{tpu_custom_call.1} parent=11 // pred_check_branch
          %220 = sbr.rel (%p218) target = $region16
        $region15: #{tpu_custom_call.1} parent=11 // pred_region
          %222 = vsyncadd [#allocation6], 0
          %s223 = sshll.u32 %s1, 4
          %s224 = int_to_ptr.hbm [resolvable:$true] %s223
          %s225 = sshll.u32 [#allocation5], 4
          %s226 = int_to_ptr.vmem [resolvable:$true] %s225
          %231 = dma.hbm_to_vmem [thread:$0]  %s224, 256, %s226, [#allocation6], 64, 64, 4
        $region16: #{tpu_custom_call.1} parent=11 // pred_fallthru
          _
        // Predicated region
        $region17: #{tpu_custom_call.1} parent=11 // pred_check
          %p232 = pneg %p105
        $region18: #{tpu_custom_call.1} parent=11 // pred_check_branch
          %234 = sbr.rel (%p232) target = $region20
        $region19: #{tpu_custom_call.1} parent=11 // pred_region
          _
        $region20: #{tpu_custom_call.1} parent=11 // pred_fallthru
          _
        // Predicated region
        $region21: #{tpu_custom_call.1} parent=11 // pred_check
          %p235 = pneg %p126
        $region22: #{tpu_custom_call.1} parent=11 // pred_check_branch
          %237 = sbr.rel (%p235) target = $region24
        $region23: #{tpu_custom_call.1} parent=11 // pred_region
          %239 = vsyncadd [#allocation6], 0
          %s240 = sshll.u32 %s3, 4
          %s241 = int_to_ptr.hbm [resolvable:$true] %s240
          %s242 = sshll.u32 [#allocation7], 4
          %s243 = int_to_ptr.vmem [resolvable:$true] %s242
          %248 = dma.hbm_to_vmem [thread:$0]  %s241, 256, %s243, [#allocation6], 64, 64, 4
        $region24: #{tpu_custom_call.1} parent=11 // pred_fallthru
          _
        // Predicated region
        $region25: #{tpu_custom_call.1} parent=11 // pred_check
          %p249 = pneg %p147
        $region26: #{tpu_custom_call.1} parent=11 // pred_check_branch
          %251 = sbr.rel (%p249) target = $region28
        $region27: #{tpu_custom_call.1} parent=11 // pred_region
          _
        $region28: #{tpu_custom_call.1} parent=11 // pred_fallthru
          _
      $region12: #{tpu_custom_call.1} parent=5 // pred_fallthru
        _
      %p252 = scmp.lt.s32.totalorder %s23, 2
      // Predicated region
      $region29: #{tpu_custom_call.1} parent=5 // pred_check
        %p253 = pneg %p252
      $region30: #{tpu_custom_call.1} parent=5 // pred_check_branch
        %255 = sbr.rel (%p253) target = $region32
      $region31: #{tpu_custom_call.1} parent=5 // pred_region
        // Predicated region
        $region33: #{tpu_custom_call.1} parent=31 // pred_check
          %p256 = pneg %p57
        $region34: #{tpu_custom_call.1} parent=31 // pred_check_branch
          %258 = sbr.rel (%p256) target = $region36
        $region35: #{tpu_custom_call.1} parent=31 // pred_region
          %s259 = sand.u32 %s47, 1
          %s260 = scalar_lea.sflag [#allocation3], %s259
          %s261 = sand.u32 %s47, 1
          %s262 = smul.addr %s261, 8
          %s263 = scalar_lea.vmem [#allocation2], %s262
          %265 = vsyncadd %s260, 0
          %s266 = sadd.s32 %s31, %s30
          %s267 = smul.addr %s266, 8
          %s268 = scalar_lea.hbm %s0, %s267
          %s270 = sshll.u32 %s268, 4
          %s271 = int_to_ptr.hbm [resolvable:$true] %s270
          %s272 = sshll.u32 %s263, 4
          %s273 = int_to_ptr.vmem [resolvable:$true] %s272
          %275 = dma.hbm_to_vmem [thread:$0]  %s271, 128, %s273, %s260
        $region36: #{tpu_custom_call.1} parent=31 // pred_fallthru
          _
      $region32: #{tpu_custom_call.1} parent=5 // pred_fallthru
        _
      %p276 = scmp.le.s32.totalorder 1, %s23
      %p277 = scmp.lt.s32.totalorder %s23, 3
      %p278 = pnand %p276, %p277
      %p279 = pneg %p278
      // Predicated region
      $region37: #{tpu_custom_call.1} parent=5 // pred_check
        _
      $region38: #{tpu_custom_call.1} parent=5 // pred_check_branch
        %281 = sbr.rel (%p278) target = $region40
      $region39: #{tpu_custom_call.1} parent=5 // pred_region
        %s282 = ssub.s32 %s23, 1
        %s283 = sand.u32 %s50, 1
        %s284 = scalar_lea.sflag [#allocation3], %s283
        %s285 = sand.u32 %s50, 1
        %s286 = smul.addr %s285, 8
        %s287 = scalar_lea.vmem [#allocation2], %s286
        // Predicated region
        $region41: #{tpu_custom_call.1} parent=39 // pred_check
          %p288 = pneg %p63
        $region42: #{tpu_custom_call.1} parent=39 // pred_check_branch
          %290 = sbr.rel (%p288) target = $region44
        $region43: #{tpu_custom_call.1} parent=39 // pred_region
          %292 = dma.done %s284, 128
        $region44: #{tpu_custom_call.1} parent=39 // pred_fallthru
          _
        // Predicated region
        $region45: #{tpu_custom_call.1} parent=39 // pred_check
          %p293 = pneg %p84
        $region46: #{tpu_custom_call.1} parent=39 // pred_check_branch
          %295 = sbr.rel (%p293) target = $region48
        $region47: #{tpu_custom_call.1} parent=39 // pred_region
          %297 = dma.done [#allocation6], 256
        $region48: #{tpu_custom_call.1} parent=39 // pred_fallthru
          _
        // Predicated region
        $region49: #{tpu_custom_call.1} parent=39 // pred_check
          %p298 = pneg %p126
        $region50: #{tpu_custom_call.1} parent=39 // pred_check_branch
          %300 = sbr.rel (%p298) target = $region52
        $region51: #{tpu_custom_call.1} parent=39 // pred_region
          %302 = dma.done [#allocation6], 256
        $region52: #{tpu_custom_call.1} parent=39 // pred_fallthru
          _
        %s303 = sand.u32 %s50, 1
        %s304 = scalar_lea.sflag [#allocation3], %s303
        %s305 = sand.u32 %s50, 1
        %s306 = smul.addr %s305, 8
        %s307 = scalar_lea.vmem [#allocation2], %s306
        %p308 = pneg %p63
        %p309 = pneg %p60
        %p310 = pneg %p84
        %p311 = pneg %p81
        %p312 = pneg %p105
        %p313 = pneg %p102
        %p314 = pneg %p126
        %p315 = pneg %p123
        %p316 = pneg %p147
        %p317 = pneg %p144
        %p318 = pneg %p175
        %p319 = pneg %p172
        %s320 = sand.u32 %s162, 1
        %s321 = scalar_lea.sflag [#allocation4], %s320
        %s322 = sand.u32 %s162, 1
        %s323 = smul.addr %s322, 4
        %s324 = scalar_lea.vmem [#allocation8], %s323
        %p325 = pneg %p203
        %p326 = pneg %p200
        %s327 = sand.u32 %s190, 1
        %s328 = scalar_lea.sflag [#allocation10], %s327
        %s329 = sand.u32 %s190, 1
        %s330 = smul.addr %s329, 4
        %s331 = scalar_lea.vmem [#allocation9], %s330
        %v333 = vld [vmem:[%s287] sm:$0xff]
        %v334 = vpack.c.bf16 %v333, %v333
        %v335 = vld [vmem:[#allocation5] sm:$0xf]
        %v336 = vld [vmem:[#allocation5 + $0x4] sm:$0xf]
        %v337 = vld [vmem:[#allocation5 + $0x8] sm:$0xf]
        %v338 = vld [vmem:[#allocation5 + $0xc] sm:$0xf]
        %v339 = vld [vmem:[%s2] sm:$0x1]
        %v341 = vperm.slane %v339, 0
        %v347 = vunpack.c.l.b16 %v335
        %v348 = vunpack.c.l.b16 %v336
        %v349 = vunpack.c.l.b16 %v337
        %v350 = vunpack.c.l.b16 %v338
        %v351 = vpack.c.b16 %v348, %v347
        %v352 = vpack.c.b16 %v350, %v349
        %vm355 = vcmask 261120
        %v357 = vsel %vm355, %v334, 0
        %359 = vmatpush.bf16.msra.mxu0 0
        %360 = vmatpush.bf16.msra.mxu0 0
        %361 = vmatpush.bf16.msra.mxu0 0
        %362 = vmatpush.bf16.msra.mxu0 0
        %363 = vmatpush.bf16.msra.mxu0 0
        %364 = vmatpush.bf16.msra.mxu0 0
        %365 = vmatpush.bf16.msra.mxu0 %v352
        %366 = vmatpush.bf16.msra.mxu0 %v351
        %367 = vmatmul.bf16.gmra.mxu0 %v357
        %v368 = vpop.f32.mrf.mxu0
        %v369 = vadd.f32 %v341, %v368
        %v370 = vpop.f32.mrf.mxu0
        %371 = vdwg.mxu0
        %v372 = vld [vmem:[#allocation7] sm:$0xf]
        %v373 = vld [vmem:[#allocation7 + $0x4] sm:$0xf]
        %v374 = vld [vmem:[#allocation7 + $0x8] sm:$0xf]
        %v375 = vld [vmem:[#allocation7 + $0xc] sm:$0xf]
        %v376 = vld [vmem:[%s4] sm:$0x1]
        %v378 = vperm.slane %v376, 0
        %v384 = vunpack.c.l.b16 %v372
        %v385 = vunpack.c.l.b16 %v373
        %v386 = vunpack.c.l.b16 %v374
        %v387 = vunpack.c.l.b16 %v375
        %v388 = vpack.c.b16 %v385, %v384
        %v389 = vpack.c.b16 %v387, %v386
        %392 = vmatpush.bf16.msra.mxu0 0
        %393 = vmatpush.bf16.msra.mxu0 0
        %394 = vmatpush.bf16.msra.mxu0 0
        %395 = vmatpush.bf16.msra.mxu0 0
        %396 = vmatpush.bf16.msra.mxu0 0
        %397 = vmatpush.bf16.msra.mxu0 0
        %398 = vmatpush.bf16.msra.mxu0 %v389
        %399 = vmatpush.bf16.msra.mxu0 %v388
        %400 = vmatmul.bf16.gmra.mxu0 %v357
        %v401 = vpop.f32.mrf.mxu0
        %v402 = vadd.f32 %v378, %v401
        %v403 = vpop.f32.mrf.mxu0
        %404 = vdwg.mxu0
        %v405 = vpack.c.bf16 %v369, %v369
        %vm406 = vcmask 257024
        %407 = vst.msk [vmem:[%s324] sm:$0xf] %vm406, %v405
        %v408 = vpack.c.bf16 %v402, %v402
        %409 = vst.msk [vmem:[%s331] sm:$0xf] %vm406, %v408
        %s410 = sand.u32 %s162, 1
        %s411 = scalar_lea.sflag [#allocation4], %s410
        %s412 = sand.u32 %s162, 1
        %s413 = smul.addr %s412, 4
        %s414 = scalar_lea.vmem [#allocation8], %s413
        %s415 = sand.u32 %s190, 1
        %s416 = scalar_lea.sflag [#allocation10], %s415
        %s417 = sand.u32 %s190, 1
        %s418 = smul.addr %s417, 4
        %s419 = scalar_lea.vmem [#allocation9], %s418
        // Predicated region
        $region53: #{tpu_custom_call.1} parent=39 // pred_check
          %p420 = pneg %p172
        $region54: #{tpu_custom_call.1} parent=39 // pred_check_branch
          %422 = sbr.rel (%p420) target = $region56
        $region55: #{tpu_custom_call.1} parent=39 // pred_region
          %424 = vsyncadd %s411, 0
          %s425 = sadd.s32 %s33, %s32
          %s426 = smul.addr %s425, 4
          %s427 = scalar_lea.hbm %s5, %s426
          %s429 = sshll.u32 %s414, 4
          %s430 = int_to_ptr.vmem [resolvable:$true] %s429
          %s431 = sshll.u32 %s427, 4
          %s432 = int_to_ptr.hbm [resolvable:$true] %s431
          %434 = dma.vmem_to_hbm [thread:$0]  %s430, 64, %s432, %s411
        $region56: #{tpu_custom_call.1} parent=39 // pred_fallthru
          _
        // Predicated region
        $region57: #{tpu_custom_call.1} parent=39 // pred_check
          %p435 = pneg %p200
        $region58: #{tpu_custom_call.1} parent=39 // pred_check_branch
          %437 = sbr.rel (%p435) target = $region60
        $region59: #{tpu_custom_call.1} parent=39 // pred_region
          %439 = vsyncadd %s416, 0
          %s440 = sadd.s32 %s33, %s32
          %s441 = smul.addr %s440, 4
          %s442 = scalar_lea.hbm %s6, %s441
          %s444 = sshll.u32 %s419, 4
          %s445 = int_to_ptr.vmem [resolvable:$true] %s444
          %s446 = sshll.u32 %s442, 4
          %s447 = int_to_ptr.hbm [resolvable:$true] %s446
          %449 = dma.vmem_to_hbm [thread:$0]  %s445, 64, %s447, %s416
        $region60: #{tpu_custom_call.1} parent=39 // pred_fallthru
          _
      $region40: #{tpu_custom_call.1} parent=5 // pred_fallthru
        _
      %p450 = scmp.le.s32.totalorder 2, %s23
      // Predicated region
      $region61: #{tpu_custom_call.1} parent=5 // pred_check
        %p451 = pneg %p450
      $region62: #{tpu_custom_call.1} parent=5 // pred_check_branch
        %453 = sbr.rel (%p451) target = $region64
      $region63: #{tpu_custom_call.1} parent=5 // pred_region
        %s454 = ssub.s32 %s23, 2
        // Predicated region
        $region65: #{tpu_custom_call.1} parent=63 // pred_check
          %p455 = pneg %p178
        $region66: #{tpu_custom_call.1} parent=63 // pred_check_branch
          %457 = sbr.rel (%p455) target = $region68
        $region67: #{tpu_custom_call.1} parent=63 // pred_region
          %s458 = sand.u32 %s163, 1
          %s459 = scalar_lea.sflag [#allocation4], %s458
          %s460 = sand.u32 %s163, 1
          %s461 = smul.addr %s460, 4
          %s462 = scalar_lea.vmem [#allocation8], %s461
          %464 = dma.done %s459, 64
        $region68: #{tpu_custom_call.1} parent=63 // pred_fallthru
          _
        // Predicated region
        $region69: #{tpu_custom_call.1} parent=63 // pred_check
          %p465 = pneg %p206
        $region70: #{tpu_custom_call.1} parent=63 // pred_check_branch
          %467 = sbr.rel (%p465) target = $region72
        $region71: #{tpu_custom_call.1} parent=63 // pred_region
          %s468 = sand.u32 %s191, 1
          %s469 = scalar_lea.sflag [#allocation10], %s468
          %s470 = sand.u32 %s191, 1
          %s471 = smul.addr %s470, 4
          %s472 = scalar_lea.vmem [#allocation9], %s471
          %474 = dma.done %s469, 64
        $region72: #{tpu_custom_call.1} parent=63 // pred_fallthru
          _
      $region64: #{tpu_custom_call.1} parent=5 // pred_fallthru
        _
    $region6: #{tpu_custom_call.1} parent=1 // loop_footer
      %s27 = sadd.s32 1, %s23
    $region7: #{tpu_custom_call.1} parent=1 // loop_footer_branch
      %22 = sbr.rel target = $region3
    $region8: #{tpu_custom_call.1} parent=1 // loop_exit
      _
    %475 = vsyncpa [#allocation3], 1
    %s476 = scalar_lea.sflag [#allocation3], 1
    %477 = vsyncpa %s476, 1
    %478 = vsyncpa [#allocation6], 1
    %479 = vsyncpa [#allocation4], 1
    %s480 = scalar_lea.sflag [#allocation4], 1
    %481 = vsyncpa %s480, 1
    %482 = vsyncpa [#allocation10], 1
    %s483 = scalar_lea.sflag [#allocation10], 1
    %484 = vsyncpa %s483, 1

// kernel: tpu_custom_call.1
$region0: #{tpu_custom_call.1}
  #allocation0 [shape = 'u32[]', space=smem, size = 0x4, offset = 0x4, fixed_abs, tag = 'smem constant byte address 0x4 - core index']
  #allocation1 [shape = 'u32[72,128]{1,0:T(1,128)}', space=vmem, size = 0x9000, scoped, tag = 'internal scratch']
  %s0 = inlined_call_operand.hbm [shape: f32[2,8,32], index: 0, kind: input, shape index: {}]
  %s1 = inlined_call_operand.hbm [shape: bf16[32,32], index: 1, kind: input, shape index: {}]
  %s2 = inlined_call_operand.vmem [shape: f32[1,32], index: 2, kind: input, shape index: {}]
  %s3 = inlined_call_operand.hbm [shape: bf16[32,32], index: 3, kind: input, shape index: {}]
  %s4 = inlined_call_operand.vmem [shape: f32[1,32], index: 4, kind: input, shape index: {}]
  %s5 = inlined_call_operand.hbm [shape: bf16[2,8,32], index: 5, kind: output, shape index: {0}]
  %s6 = inlined_call_operand.hbm [shape: bf16[2,8,32], index: 6, kind: output, shape index: {1}]
  %7 = xla_tuple %s5, %s6
  %s8 = sld [smem:[#allocation0]]
  $region73: #{tpu_custom_call.1} parent=0
    _
  %s10 = ssub.s32 1, %s8
  %s11 = scalar_select 0, %s10, %s8
  $region1: #{tpu_custom_call.1} parent=0
    #allocation2 [shape = 'u8[8192]{0}', space=vmem, size = 0x2000, scoped, tag = 'input window, operand 0']
    #allocation3 [shape = 's32[2]{0}', space=sflag, size = 0x8, scoped, tag = 'scoped memory for tpu_custom_call.1']
    #allocation4 [shape = 's32[2]{0}', space=sflag, size = 0x8, scoped, tag = 'scoped memory for tpu_custom_call.1']
    #allocation5 [shape = 'u8[8192]{0}', space=vmem, size = 0x2000, scoped, tag = 'input window, operand 1, single buffered']
    #allocation6 [shape = 's32[1]{0}', space=sflag, size = 0x4, scoped, tag = 'scoped memory for tpu_custom_call.1']
    #allocation7 [shape = 'u8[8192]{0}', space=vmem, size = 0x2000, scoped, tag = 'input window, operand 3, single buffered']
    #allocation8 [shape = 'u8[4096]{0}', space=vmem, size = 0x1000, scoped, tag = 'output window, operand 0']
    #allocation9 [shape = 'u8[4096]{0}', space=vmem, size = 0x1000, scoped, tag = 'output window, operand 1']
    #allocation10 [shape = 's32[2]{0}', space=sflag, size = 0x8, scoped, tag = 'scoped memory for tpu_custom_call.1']
    %12 = vsyncpa [#allocation3], 0
    %s13 = scalar_lea.sflag [#allocation3], 1
    %14 = vsyncpa %s13, 0
    %15 = vsyncpa [#allocation6], 0
    %16 = vsyncpa [#allocation4], 0
    %s17 = scalar_lea.sflag [#allocation4], 1
    %18 = vsyncpa %s17, 0
    %19 = vsyncpa [#allocation10], 0
    %s20 = scalar_lea.sflag [#allocation10], 1
    %21 = vsyncpa %s20, 0
    loop: start=0, step=1, limit=4
    $region2: #{tpu_custom_call.1} parent=1 // loop_pre_header
      _
    $region3: #{tpu_custom_call.1} parent=1 // loop_header
      %s23 = sphi 0, %s27
      %p24 = scmp.ge.s32.totalorder %s23, 4
      %s30 = sphi 0, %s42
      %s31 = sphi 0, %s38
      %s32 = sphi 0, %s30
      %s33 = sphi 0, %s31
      %s34 = sphi 0, %s32
      %s35 = sphi 0, %s33
      %s47 = sphi 0, %s49
      %s50 = sphi 0, %s47
      %s51 = sphi 0, %s50
      %s67 = sphi 0, %s51
      %s71 = sphi 0, %s71
      %s73 = sphi 0, %s71
      %s74 = sphi 0, %s73
      %s88 = sphi 0, %s74
      %s92 = sphi 0, %s92
      %s94 = sphi 0, %s92
      %s95 = sphi 0, %s94
      %s109 = sphi 0, %s95
      %s113 = sphi 0, %s113
      %s115 = sphi 0, %s113
      %s116 = sphi 0, %s115
      %s130 = sphi 0, %s116
      %s134 = sphi 0, %s134
      %s136 = sphi 0, %s134
      %s137 = sphi 0, %s136
      %s151 = sphi 0, %s137
      %s159 = sphi 0, %s161
      %s162 = sphi 0, %s159
      %s163 = sphi 0, %s162
      %s179 = sphi 0, %s163
      %s187 = sphi 0, %s189
      %s190 = sphi 0, %s187
      %s191 = sphi 0, %s190
      %s207 = sphi 0, %s191
    $region4: #{tpu_custom_call.1} parent=1 // loop_header_branch
      %26 = sbr.rel (%p24) target = $region8
    $region5: #{tpu_custom_call.1} parent=1 // loop_body
      %s28 = ssub.s32 %s23, 1
      %s29 = ssub.s32 %s23, 2
      %s36 = sadd.s32 1, %s31
      %p37 = scmp.ge.s32.totalorder %s36, 1
      %s38 = scalar_select %p37, 0, %s36
      %s39 = sadd.s32 1, %s30
      %s40 = scalar_select %p37, %s39, %s30
      %p41 = scmp.ge.s32.totalorder %s40, 2
      %s42 = scalar_select %p41, 0, %s40
      %s43 = ssub.s32 %s30, %s42
      %s44 = ssub.s32 %s31, %s38
      %s45 = sor.u32 %s43, %s44
      %p46 = scmp.eq.s32.totalorder %s45, 0
      %s48 = sadd.s32 %s47, 1
      %s49 = scalar_select %p46, %s47, %s48
      %p52 = pneg %p46
      %p53 = scmp.eq.s32.totalorder %s23, 1
      %p54 = por %p52, %p53
      %p55 = scmp.ne.s32.totalorder %s47, %s50
      %p56 = scmp.eq.s32.totalorder %s23, 0
      %p57 = por %p55, %p56
      %p58 = scmp.ne.s32.totalorder %s47, %s50
      %p59 = scmp.eq.s32.totalorder %s28, 1
      %p60 = por %p58, %p59
      %p61 = scmp.ne.s32.totalorder %s50, %s51
      %p62 = scmp.eq.s32.totalorder %s28, 0
      %p63 = por %p61, %p62
      %p64 = scmp.ne.s32.totalorder %s50, %s51
      %p65 = scmp.eq.s32.totalorder %s29, 1
      %p66 = por %p64, %p65
      %p68 = scmp.ne.s32.totalorder %s51, %s67
      %p69 = scmp.eq.s32.totalorder %s29, 0
      %p70 = por %p68, %p69
      %s72 = sadd.s32 %s71, 1
      %p75 = scmp.eq.s32.totalorder %s23, 1
      %p76 = scmp.ne.s32.totalorder %s71, %s73
      %p77 = scmp.eq.s32.totalorder %s23, 0
      %p78 = por %p76, %p77
      %p79 = scmp.ne.s32.totalorder %s71, %s73
      %p80 = scmp.eq.s32.totalorder %s28, 1
      %p81 = por %p79, %p80
      %p82 = scmp.ne.s32.totalorder %s73, %s74
      %p83 = scmp.eq.s32.totalorder %s28, 0
      %p84 = por %p82, %p83
      %p85 = scmp.ne.s32.totalorder %s73, %s74
      %p86 = scmp.eq.s32.totalorder %s29, 1
      %p87 = por %p85, %p86
      %p89 = scmp.ne.s32.totalorder %s74, %s88
      %p90 = scmp.eq.s32.totalorder %s29, 0
      %p91 = por %p89, %p90
      %s93 = sadd.s32 %s92, 1
      %p96 = scmp.eq.s32.totalorder %s23, 1
      %p97 = scmp.ne.s32.totalorder %s92, %s94
      %p98 = scmp.eq.s32.totalorder %s23, 0
      %p99 = por %p97, %p98
      %p100 = scmp.ne.s32.totalorder %s92, %s94
      %p101 = scmp.eq.s32.totalorder %s28, 1
      %p102 = por %p100, %p101
      %p103 = scmp.ne.s32.totalorder %s94, %s95
      %p104 = scmp.eq.s32.totalorder %s28, 0
      %p105 = por %p103, %p104
      %p106 = scmp.ne.s32.totalorder %s94, %s95
      %p107 = scmp.eq.s32.totalorder %s29, 1
      %p108 = por %p106, %p107
      %p110 = scmp.ne.s32.totalorder %s95, %s109
      %p111 = scmp.eq.s32.totalorder %s29, 0
      %p112 = por %p110, %p111
      %s114 = sadd.s32 %s113, 1
      %p117 = scmp.eq.s32.totalorder %s23, 1
      %p118 = scmp.ne.s32.totalorder %s113, %s115
      %p119 = scmp.eq.s32.totalorder %s23, 0
      %p120 = por %p118, %p119
      %p121 = scmp.ne.s32.totalorder %s113, %s115
      %p122 = scmp.eq.s32.totalorder %s28, 1
      %p123 = por %p121, %p122
      %p124 = scmp.ne.s32.totalorder %s115, %s116
      %p125 = scmp.eq.s32.totalorder %s28, 0
      %p126 = por %p124, %p125
      %p127 = scmp.ne.s32.totalorder %s115, %s116
      %p128 = scmp.eq.s32.totalorder %s29, 1
      %p129 = por %p127, %p128
      %p131 = scmp.ne.s32.totalorder %s116, %s130
      %p132 = scmp.eq.s32.totalorder %s29, 0
      %p133 = por %p131, %p132
      %s135 = sadd.s32 %s134, 1
      %p138 = scmp.eq.s32.totalorder %s23, 1
      %p139 = scmp.ne.s32.totalorder %s134, %s136
      %p140 = scmp.eq.s32.totalorder %s23, 0
      %p141 = por %p139, %p140
      %p142 = scmp.ne.s32.totalorder %s134, %s136
      %p143 = scmp.eq.s32.totalorder %s28, 1
      %p144 = por %p142, %p143
      %p145 = scmp.ne.s32.totalorder %s136, %s137
      %p146 = scmp.eq.s32.totalorder %s28, 0
      %p147 = por %p145, %p146
      %p148 = scmp.ne.s32.totalorder %s136, %s137
      %p149 = scmp.eq.s32.totalorder %s29, 1
      %p150 = por %p148, %p149
      %p152 = scmp.ne.s32.totalorder %s137, %s151
      %p153 = scmp.eq.s32.totalorder %s29, 0
      %p154 = por %p152, %p153
      %s155 = ssub.s32 %s30, %s42
      %s156 = ssub.s32 %s31, %s38
      %s157 = sor.u32 %s155, %s156
      %p158 = scmp.eq.s32.totalorder %s157, 0
      %s160 = sadd.s32 %s159, 1
      %s161 = scalar_select %p158, %s159, %s160
      %p164 = pneg %p158
      %p165 = scmp.eq.s32.totalorder %s23, 1
      %p166 = por %p164, %p165
      %p167 = scmp.ne.s32.totalorder %s159, %s162
      %p168 = scmp.eq.s32.totalorder %s23, 0
      %p169 = por %p167, %p168
      %p170 = scmp.ne.s32.totalorder %s159, %s162
      %p171 = scmp.eq.s32.totalorder %s28, 1
      %p172 = por %p170, %p171
      %p173 = scmp.ne.s32.totalorder %s162, %s163
      %p174 = scmp.eq.s32.totalorder %s28, 0
      %p175 = por %p173, %p174
      %p176 = scmp.ne.s32.totalorder %s162, %s163
      %p177 = scmp.eq.s32.totalorder %s29, 1
      %p178 = por %p176, %p177
      %p180 = scmp.ne.s32.totalorder %s163, %s179
      %p181 = scmp.eq.s32.totalorder %s29, 0
      %p182 = por %p180, %p181
      %s183 = ssub.s32 %s30, %s42
      %s184 = ssub.s32 %s31, %s38
      %s185 = sor.u32 %s183, %s184
      %p186 = scmp.eq.s32.totalorder %s185, 0
      %s188 = sadd.s32 %s187, 1
      %s189 = scalar_select %p186, %s187, %s188
      %p192 = pneg %p186
      %p193 = scmp.eq.s32.totalorder %s23, 1
      %p194 = por %p192, %p193
      %p195 = scmp.ne.s32.totalorder %s187, %s190
      %p196 = scmp.eq.s32.totalorder %s23, 0
      %p197 = por %p195, %p196
      %p198 = scmp.ne.s32.totalorder %s187, %s190
      %p199 = scmp.eq.s32.totalorder %s28, 1
      %p200 = por %p198, %p199
      %p201 = scmp.ne.s32.totalorder %s190, %s191
      %p202 = scmp.eq.s32.totalorder %s28, 0
      %p203 = por %p201, %p202
      %p204 = scmp.ne.s32.totalorder %s190, %s191
      %p205 = scmp.eq.s32.totalorder %s29, 1
      %p206 = por %p204, %p205
      %p208 = scmp.ne.s32.totalorder %s191, %s207
      %p209 = scmp.eq.s32.totalorder %s29, 0
      %p210 = por %p208, %p209
      %p211 = scmp.le.s32.totalorder 1, %s23
      %p212 = scmp.lt.s32.totalorder %s23, 3
      %p213 = pnand %p211, %p212
      %p214 = pneg %p213
      // Predicated region
      $region9: #{tpu_custom_call.1} parent=5 // pred_check
        _
      $region10: #{tpu_custom_call.1} parent=5 // pred_check_branch
        %216 = sbr.rel (%p213) target = $region12
      $region11: #{tpu_custom_call.1} parent=5 // pred_region
        %s217 = ssub.s32 %s23, 1
        // Predicated region
        $region13: #{tpu_custom_call.1} parent=11 // pred_check
          %p218 = pneg %p84
        $region14: #{tpu_custom_call.1} parent=11 // pred_check_branch
          %220 = sbr.rel (%p218) target = $region16
        $region15: #{tpu_custom_call.1} parent=11 // pred_region
          %222 = vsyncadd [#allocation6], 0
          %s223 = sshll.u32 %s1, 4
          %s224 = int_to_ptr.hbm [resolvable:$true] %s223
          %s225 = sshll.u32 [#allocation5], 4
          %s226 = int_to_ptr.vmem [resolvable:$true] %s225
          %231 = dma.hbm_to_vmem [thread:$0]  %s224, 256, %s226, [#allocation6], 64, 64, 4
        $region16: #{tpu_custom_call.1} parent=11 // pred_fallthru
          _
        // Predicated region
        $region17: #{tpu_custom_call.1} parent=11 // pred_check
          %p232 = pneg %p105
        $region18: #{tpu_custom_call.1} parent=11 // pred_check_branch
          %234 = sbr.rel (%p232) target = $region20
        $region19: #{tpu_custom_call.1} parent=11 // pred_region
          _
        $region20: #{tpu_custom_call.1} parent=11 // pred_fallthru
          _
        // Predicated region
        $region21: #{tpu_custom_call.1} parent=11 // pred_check
          %p235 = pneg %p126
        $region22: #{tpu_custom_call.1} parent=11 // pred_check_branch
          %237 = sbr.rel (%p235) target = $region24
        $region23: #{tpu_custom_call.1} parent=11 // pred_region
          %239 = vsyncadd [#allocation6], 0
          %s240 = sshll.u32 %s3, 4
          %s241 = int_to_ptr.hbm [resolvable:$true] %s240
          %s242 = sshll.u32 [#allocation7], 4
          %s243 = int_to_ptr.vmem [resolvable:$true] %s242
          %248 = dma.hbm_to_vmem [thread:$0]  %s241, 256, %s243, [#allocation6], 64, 64, 4
        $region24: #{tpu_custom_call.1} parent=11 // pred_fallthru
          _
        // Predicated region
        $region25: #{tpu_custom_call.1} parent=11 // pred_check
          %p249 = pneg %p147
        $region26: #{tpu_custom_call.1} parent=11 // pred_check_branch
          %251 = sbr.rel (%p249) target = $region28
        $region27: #{tpu_custom_call.1} parent=11 // pred_region
          _
        $region28: #{tpu_custom_call.1} parent=11 // pred_fallthru
          _
      $region12: #{tpu_custom_call.1} parent=5 // pred_fallthru
        _
      %p252 = scmp.lt.s32.totalorder %s23, 2
      // Predicated region
      $region29: #{tpu_custom_call.1} parent=5 // pred_check
        %p253 = pneg %p252
      $region30: #{tpu_custom_call.1} parent=5 // pred_check_branch
        %255 = sbr.rel (%p253) target = $region32
      $region31: #{tpu_custom_call.1} parent=5 // pred_region
        // Predicated region
        $region33: #{tpu_custom_call.1} parent=31 // pred_check
          %p256 = pneg %p57
        $region34: #{tpu_custom_call.1} parent=31 // pred_check_branch
          %258 = sbr.rel (%p256) target = $region36
        $region35: #{tpu_custom_call.1} parent=31 // pred_region
          %s259 = sand.u32 %s47, 1
          %s260 = scalar_lea.sflag [#allocation3], %s259
          %s261 = sand.u32 %s47, 1
          %s262 = smul.addr %s261, 8
          %s263 = scalar_lea.vmem [#allocation2], %s262
          %265 = vsyncadd %s260, 0
          %s266 = sadd.s32 %s31, %s30
          %s267 = smul.addr %s266, 8
          %s268 = scalar_lea.hbm %s0, %s267
          %s270 = sshll.u32 %s268, 4
          %s271 = int_to_ptr.hbm [resolvable:$true] %s270
          %s272 = sshll.u32 %s263, 4
          %s273 = int_to_ptr.vmem [resolvable:$true] %s272
          %275 = dma.hbm_to_vmem [thread:$0]  %s271, 128, %s273, %s260
        $region36: #{tpu_custom_call.1} parent=31 // pred_fallthru
          _
      $region32: #{tpu_custom_call.1} parent=5 // pred_fallthru
        _
      %p276 = scmp.le.s32.totalorder 1, %s23
      %p277 = scmp.lt.s32.totalorder %s23, 3
      %p278 = pnand %p276, %p277
      %p279 = pneg %p278
      // Predicated region
      $region37: #{tpu_custom_call.1} parent=5 // pred_check
        _
      $region38: #{tpu_custom_call.1} parent=5 // pred_check_branch
        %281 = sbr.rel (%p278) target = $region40
      $region39: #{tpu_custom_call.1} parent=5 // pred_region
        %s282 = ssub.s32 %s23, 1
        %s283 = sand.u32 %s50, 1
        %s284 = scalar_lea.sflag [#allocation3], %s283
        %s285 = sand.u32 %s50, 1
        %s286 = smul.addr %s285, 8
        %s287 = scalar_lea.vmem [#allocation2], %s286
        // Predicated region
        $region41: #{tpu_custom_call.1} parent=39 // pred_check
          %p288 = pneg %p63
        $region42: #{tpu_custom_call.1} parent=39 // pred_check_branch
          %290 = sbr.rel (%p288) target = $region44
        $region43: #{tpu_custom_call.1} parent=39 // pred_region
          %292 = dma.done %s284, 128
        $region44: #{tpu_custom_call.1} parent=39 // pred_fallthru
          _
        // Predicated region
        $region45: #{tpu_custom_call.1} parent=39 // pred_check
          %p293 = pneg %p84
        $region46: #{tpu_custom_call.1} parent=39 // pred_check_branch
          %295 = sbr.rel (%p293) target = $region48
        $region47: #{tpu_custom_call.1} parent=39 // pred_region
          %297 = dma.done [#allocation6], 256
        $region48: #{tpu_custom_call.1} parent=39 // pred_fallthru
          _
        // Predicated region
        $region49: #{tpu_custom_call.1} parent=39 // pred_check
          %p298 = pneg %p126
        $region50: #{tpu_custom_call.1} parent=39 // pred_check_branch
          %300 = sbr.rel (%p298) target = $region52
        $region51: #{tpu_custom_call.1} parent=39 // pred_region
          %302 = dma.done [#allocation6], 256
        $region52: #{tpu_custom_call.1} parent=39 // pred_fallthru
          _
        %s303 = sand.u32 %s50, 1
        %s304 = scalar_lea.sflag [#allocation3], %s303
        %s305 = sand.u32 %s50, 1
        %s306 = smul.addr %s305, 8
        %s307 = scalar_lea.vmem [#allocation2], %s306
        %p308 = pneg %p63
        %p309 = pneg %p60
        %p310 = pneg %p84
        %p311 = pneg %p81
        %p312 = pneg %p105
        %p313 = pneg %p102
        %p314 = pneg %p126
        %p315 = pneg %p123
        %p316 = pneg %p147
        %p317 = pneg %p144
        %p318 = pneg %p175
        %p319 = pneg %p172
        %s320 = sand.u32 %s162, 1
        %s321 = scalar_lea.sflag [#allocation4], %s320
        %s322 = sand.u32 %s162, 1
        %s323 = smul.addr %s322, 4
        %s324 = scalar_lea.vmem [#allocation8], %s323
        %p325 = pneg %p203
        %p326 = pneg %p200
        %s327 = sand.u32 %s190, 1
        %s328 = scalar_lea.sflag [#allocation10], %s327
        %s329 = sand.u32 %s190, 1
        %s330 = smul.addr %s329, 4
        %s331 = scalar_lea.vmem [#allocation9], %s330
        %v333 = vld [vmem:[%s287] sm:$0xff]
        %v334 = vpack.c.bf16 %v333, %v333
        %v335 = vld [vmem:[#allocation5] sm:$0xf]
        %v336 = vld [vmem:[#allocation5 + $0x4] sm:$0xf]
        %v337 = vld [vmem:[#allocation5 + $0x8] sm:$0xf]
        %v338 = vld [vmem:[#allocation5 + $0xc] sm:$0xf]
        %v339 = vld [vmem:[%s2] sm:$0x1]
        %v341 = vperm.slane %v339, 0
        %v347 = vunpack.c.l.b16 %v335
        %v348 = vunpack.c.l.b16 %v336
        %v349 = vunpack.c.l.b16 %v337
        %v350 = vunpack.c.l.b16 %v338
        %v351 = vpack.c.b16 %v348, %v347
        %v352 = vpack.c.b16 %v350, %v349
        %vm355 = vcmask 261120
        %v357 = vsel %vm355, %v334, 0
        %359 = vmatpush.bf16.msra.mxu0 0
        %360 = vmatpush.bf16.msra.mxu0 0
        %361 = vmatpush.bf16.msra.mxu0 0
        %362 = vmatpush.bf16.msra.mxu0 0
        %363 = vmatpush.bf16.msra.mxu0 0
        %364 = vmatpush.bf16.msra.mxu0 0
        %365 = vmatpush.bf16.msra.mxu0 %v352
        %366 = vmatpush.bf16.msra.mxu0 %v351
        %367 = vmatmul.bf16.gmra.mxu0 %v357
        %v368 = vpop.f32.mrf.mxu0
        %v369 = vadd.f32 %v341, %v368
        %v370 = vpop.f32.mrf.mxu0
        %371 = vdwg.mxu0
        %v372 = vld [vmem:[#allocation7] sm:$0xf]
        %v373 = vld [vmem:[#allocation7 + $0x4] sm:$0xf]
        %v374 = vld [vmem:[#allocation7 + $0x8] sm:$0xf]
        %v375 = vld [vmem:[#allocation7 + $0xc] sm:$0xf]
        %v376 = vld [vmem:[%s4] sm:$0x1]
        %v378 = vperm.slane %v376, 0
        %v384 = vunpack.c.l.b16 %v372
        %v385 = vunpack.c.l.b16 %v373
        %v386 = vunpack.c.l.b16 %v374
        %v387 = vunpack.c.l.b16 %v375
        %v388 = vpack.c.b16 %v385, %v384
        %v389 = vpack.c.b16 %v387, %v386
        %392 = vmatpush.bf16.msra.mxu0 0
        %393 = vmatpush.bf16.msra.mxu0 0
        %394 = vmatpush.bf16.msra.mxu0 0
        %395 = vmatpush.bf16.msra.mxu0 0
        %396 = vmatpush.bf16.msra.mxu0 0
        %397 = vmatpush.bf16.msra.mxu0 0
        %398 = vmatpush.bf16.msra.mxu0 %v389
        %399 = vmatpush.bf16.msra.mxu0 %v388
        %400 = vmatmul.bf16.gmra.mxu0 %v357
        %v401 = vpop.f32.mrf.mxu0
        %v402 = vadd.f32 %v378, %v401
        %v403 = vpop.f32.mrf.mxu0
        %404 = vdwg.mxu0
        %v405 = vpack.c.bf16 %v369, %v369
        %vm406 = vcmask 257024
        %407 = vst.msk [vmem:[%s324] sm:$0xf] %vm406, %v405
        %v408 = vpack.c.bf16 %v402, %v402
        %409 = vst.msk [vmem:[%s331] sm:$0xf] %vm406, %v408
        %s410 = sand.u32 %s162, 1
        %s411 = scalar_lea.sflag [#allocation4], %s410
        %s412 = sand.u32 %s162, 1
        %s413 = smul.addr %s412, 4
        %s414 = scalar_lea.vmem [#allocation8], %s413
        %s415 = sand.u32 %s190, 1
        %s416 = scalar_lea.sflag [#allocation10], %s415
        %s417 = sand.u32 %s190, 1
        %s418 = smul.addr %s417, 4
        %s419 = scalar_lea.vmem [#allocation9], %s418
        // Predicated region
        $region53: #{tpu_custom_call.1} parent=39 // pred_check
          %p420 = pneg %p172
        $region54: #{tpu_custom_call.1} parent=39 // pred_check_branch
          %422 = sbr.rel (%p420) target = $region56
        $region55: #{tpu_custom_call.1} parent=39 // pred_region
          %424 = vsyncadd %s411, 0
          %s425 = sadd.s32 %s33, %s32
          %s426 = smul.addr %s425, 4
          %s427 = scalar_lea.hbm %s5, %s426
          %s429 = sshll.u32 %s414, 4
          %s430 = int_to_ptr.vmem [resolvable:$true] %s429
          %s431 = sshll.u32 %s427, 4
          %s432 = int_to_ptr.hbm [resolvable:$true] %s431
          %434 = dma.vmem_to_hbm [thread:$0]  %s430, 64, %s432, %s411
        $region56: #{tpu_custom_call.1} parent=39 // pred_fallthru
          _
        // Predicated region
        $region57: #{tpu_custom_call.1} parent=39 // pred_check
          %p435 = pneg %p200
        $region58: #{tpu_custom_call.1} parent=39 // pred_check_branch
          %437 = sbr.rel (%p435) target = $region60
        $region59: #{tpu_custom_call.1} parent=39 // pred_region
          %439 = vsyncadd %s416, 0
          %s440 = sadd.s32 %s33, %s32
          %s441 = smul.addr %s440, 4
          %s442 = scalar_lea.hbm %s6, %s441
          %s444 = sshll.u32 %s419, 4
          %s445 = int_to_ptr.vmem [resolvable:$true] %s444
          %s446 = sshll.u32 %s442, 4
          %s447 = int_to_ptr.hbm [resolvable:$true] %s446
          %449 = dma.vmem_to_hbm [thread:$0]  %s445, 64, %s447, %s416
        $region60: #{tpu_custom_call.1} parent=39 // pred_fallthru
          _
      $region40: #{tpu_custom_call.1} parent=5 // pred_fallthru
        _
      %p450 = scmp.le.s32.totalorder 2, %s23
      // Predicated region
      $region61: #{tpu_custom_call.1} parent=5 // pred_check
        %p451 = pneg %p450
      $region62: #{tpu_custom_call.1} parent=5 // pred_check_branch
        %453 = sbr.rel (%p451) target = $region64
      $region63: #{tpu_custom_call.1} parent=5 // pred_region
        %s454 = ssub.s32 %s23, 2
        // Predicated region
        $region65: #{tpu_custom_call.1} parent=63 // pred_check
          %p455 = pneg %p178
        $region66: #{tpu_custom_call.1} parent=63 // pred_check_branch
          %457 = sbr.rel (%p455) target = $region68
        $region67: #{tpu_custom_call.1} parent=63 // pred_region
          %s458 = sand.u32 %s163, 1
          %s459 = scalar_lea.sflag [#allocation4], %s458
          %s460 = sand.u32 %s163, 1
          %s461 = smul.addr %s460, 4
          %s462 = scalar_lea.vmem [#allocation8], %s461
          %464 = dma.done %s459, 64
        $region68: #{tpu_custom_call.1} parent=63 // pred_fallthru
          _
        // Predicated region
        $region69: #{tpu_custom_call.1} parent=63 // pred_check
          %p465 = pneg %p206
        $region70: #{tpu_custom_call.1} parent=63 // pred_check_branch
          %467 = sbr.rel (%p465) target = $region72
        $region71: #{tpu_custom_call.1} parent=63 // pred_region
          %s468 = sand.u32 %s191, 1
          %s469 = scalar_lea.sflag [#allocation10], %s468
          %s470 = sand.u32 %s191, 1
          %s471 = smul.addr %s470, 4
          %s472 = scalar_lea.vmem [#allocation9], %s471
          %474 = dma.done %s469, 64
        $region72: #{tpu_custom_call.1} parent=63 // pred_fallthru
          _
      $region64: #{tpu_custom_call.1} parent=5 // pred_fallthru
        _
    $region6: #{tpu_custom_call.1} parent=1 // loop_footer
      %s27 = sadd.s32 1, %s23
    $region7: #{tpu_custom_call.1} parent=1 // loop_footer_branch
      %22 = sbr.rel target = $region3
    $region8: #{tpu_custom_call.1} parent=1 // loop_exit
      _
    %475 = vsyncpa [#allocation3], 1
    %s476 = scalar_lea.sflag [#allocation3], 1
    %477 = vsyncpa %s476, 1
    %478 = vsyncpa [#allocation6], 1
    %479 = vsyncpa [#allocation4], 1
    %s480 = scalar_lea.sflag [#allocation4], 1
    %481 = vsyncpa %s480, 1
    %482 = vsyncpa [#allocation10], 1
    %s483 = scalar_lea.sflag [#allocation10], 1
    %484 = vsyncpa %s483, 1

</llo_original>
